<compile_context>
chip_gen: v5e
topology: v5e:2x2
jax: 0.10.0
libtpu: 0.0.40
codegen_flags: <defaults>
</compile_context>

<pallas_src>
import jax
import jax.numpy as jnp
from jax.experimental import pallas as pl
from jax.experimental.pallas import tpu as pltpu

# Fixed (non-trainable) Sobel kernels from GradLayer.__init__.
KERNEL_V = ((-1.0, 0.0, 1.0),
            (-2.0, 0.0, 2.0),
            (-1.0, 0.0, 1.0))
KERNEL_H = (( 1.0,  2.0,  1.0),
            ( 0.0,  0.0,  0.0),
            (-1.0, -2.0, -1.0))
# Separable decomposition used by the kernel:
#   kernel_v = [1,2,1]^T (rows)  x  [-1,0,1] (cols)
#   kernel_h = [1,0,-1]^T (rows) x  [ 1,2,1] (cols)


def _make_grad_kernel(coeffs, C, TH, W):
    """coeffs: static gray coefficients; TH x W: spatial tile handled per step."""

    def kernel(x_ref, top_ref, bot_ref, o_ref, gp_ref):
        # x_ref:   (1, C, TH, W)   unpadded row tile
        # top_ref: (1, 1, C, W)    row directly above the tile (zeros at image top)
        # bot_ref: (1, 1, C, W)    row directly below the tile (zeros at image bottom)
        # o_ref:   (1, 1, TH, W)
        # gp_ref:  (TH+2, W+2) f32 VMEM scratch: zero-padded grayscale tile.
        x_all = x_ref[0].astype(jnp.float32)        # (C, TH, W)
        t_all = top_ref[0, 0].astype(jnp.float32)   # (C, W)
        b_all = bot_ref[0, 0].astype(jnp.float32)   # (C, W)

        # Grayscale conversion (get_gray); coefficients folded in at trace time.
        if C == 1:
            gray, g_top, g_bot = x_all[0], t_all[0:1, :], b_all[0:1, :]
        else:
            gray = coeffs[0] * x_all[0]
            g_top = coeffs[0] * t_all[0:1, :]
            g_bot = coeffs[0] * b_all[0:1, :]
            for c in range(1, C):
                gray = gray + coeffs[c] * x_all[c]
                g_top = g_top + coeffs[c] * t_all[c:c + 1, :]
                g_bot = g_bot + coeffs[c] * b_all[c:c + 1, :]

        # Assemble the 1-pixel-halo grayscale tile in VMEM (no HBM pad traffic).
        gp_ref[0:1, 1:W + 1] = g_top
        gp_ref[1:TH + 1, 1:W + 1] = gray
        gp_ref[TH + 1:TH + 2, 1:W + 1] = g_bot
        zcol = jnp.zeros((TH + 2, 1), jnp.float32)
        gp_ref[:, 0:1] = zcol
        gp_ref[:, W + 1:W + 2] = zcol

        gp = gp_ref[...]                            # (TH+2, W+2)

        # Separable Sobel: vertical 1-D passes (sublane shifts) ...
        r0 = gp[0:TH, :]
        r1 = gp[1:TH + 1, :]
        r2 = gp[2:TH + 2, :]
        smooth_v = r0 + 2.0 * r1 + r2               # rows (*) [1, 2, 1]
        diff_v = r0 - r2                            # rows (*) [1, 0, -1]

        # ... then horizontal 1-D passes (lane shifts); F.conv2d is cross-correlation.
        x_v = smooth_v[:, 2:] - smooth_v[:, :W]                          # cols (*) [-1, 0, 1]
        x_h = diff_v[:, :W] + 2.0 * diff_v[:, 1:W + 1] + diff_v[:, 2:]   # cols (*) [ 1, 2, 1]

        mag = jnp.sqrt(x_v * x_v + x_h * x_h + 1e-6)
        o_ref[0, 0, :, :] = mag.astype(o_ref.dtype)

    return kernel


def _pick_row_tile(H, target):
    """Largest row tile <= target that divides H and is sublane-aligned (or H itself)."""
    if H <= target:
        return H
    for th in range(min(target, H), 0, -1):
        if H % th == 0 and (th % 8 == 0 or th == H):
            return th
    return H


def grad_layer(x, row_tile=256):
    """Pallas implementation of GradLayer.forward.  x: (N, C, H, W), C in {1, 3}."""
    N, C, H, W = x.shape
    if C == 3:
        # get_gray: sum_c x[:, c] * gray_coeffs[c] / 256
        coeffs = tuple(g / 256.0 for g in (65.738, 129.057, 25.064))
    elif C == 1:
        coeffs = (1.0,)
    else:
        raise ValueError("GradLayer expects 1 or 3 input channels")

    TH = _pick_row_tile(H, row_tile)
    T = H // TH

    # Per-row-tile halo rows (row above / below each tile); zeros at image borders.
    # Shape (N, T, C, W): ~2/TH of the input in extra HBM traffic, vs ~2x for a
    # full host-side pad.
    zrow = jnp.zeros((N, C, 1, W), x.dtype)
    if T > 1:
        top = jnp.concatenate([zrow, x[:, :, TH - 1:H - 1:TH, :]], axis=2)
        bot = jnp.concatenate([x[:, :, TH:H:TH, :], zrow], axis=2)
    else:
        top = zrow
        bot = zrow
    top = jnp.transpose(top, (0, 2, 1, 3))   # (N, T, C, W)
    bot = jnp.transpose(bot, (0, 2, 1, 3))   # (N, T, C, W)

    # Scoped VMEM: double-buffered blocks + f32 temporaries + scratch, capped at 64 MiB.
    elt = x.dtype.itemsize
    block_bytes = (2 * (C * TH * W + 2 * C * W + TH * W) * elt
                   + 10 * TH * W * 4 + (TH + 2) * (W + 2) * 4)
    vmem_limit = int(min(64 * 2**20, max(32 * 2**20, 2 * block_bytes)))

    kernel = _make_grad_kernel(coeffs, C, TH, W)
    return pl.pallas_call(
        kernel,
        out_shape=jax.ShapeDtypeStruct((N, 1, H, W), x.dtype),
        grid_spec=pltpu.PrefetchScalarGridSpec(
            num_scalar_prefetch=0,
            grid=(N, T),
            in_specs=[
                pl.BlockSpec((1, C, TH, W), lambda n, t: (n, 0, t, 0)),
                pl.BlockSpec((1, 1, C, W), lambda n, t: (n, t, 0, 0)),
                pl.BlockSpec((1, 1, C, W), lambda n, t: (n, t, 0, 0)),
            ],
            out_specs=pl.BlockSpec((1, 1, TH, W), lambda n, t: (n, 0, t, 0)),
            scratch_shapes=[pltpu.VMEM((TH + 2, W + 2), jnp.float32)],
        ),
        compiler_params=pltpu.CompilerParams(
            dimension_semantics=("parallel", "parallel"),
            vmem_limit_bytes=vmem_limit,
        ),
    )(x, top, bot)


def _grad_layer_ref(x):
    """Pure-JAX reference matching the PyTorch semantics."""
    N, C, H, W = x.shape
    if C == 3:
        coeffs = jnp.array([65.738, 129.057, 25.064], jnp.float32) / 256.0
        g = jnp.sum(x.astype(jnp.float32) * coeffs.reshape(1, 3, 1, 1), axis=1, keepdims=True)
    else:
        g = x.astype(jnp.float32)
    kv = jnp.array(KERNEL_V, jnp.float32).reshape(1, 1, 3, 3)
    kh = jnp.array(KERNEL_H, jnp.float32).reshape(1, 1, 3, 3)
    dn = jax.lax.conv_dimension_numbers(g.shape, kv.shape, ("NCHW", "OIHW", "NCHW"))
    xv = jax.lax.conv_general_dilated(g, kv, (1, 1), ((1, 1), (1, 1)), dimension_numbers=dn)
    xh = jax.lax.conv_general_dilated(g, kh, (1, 1), ((1, 1), (1, 1)), dimension_numbers=dn)
    return jnp.sqrt(xv * xv + xh * xh + 1e-6).astype(x.dtype)


if __name__ == "__main__":
    key = jax.random.PRNGKey(0)
    x = jax.random.uniform(key, (2, 3, 16, 16), dtype=jnp.float32)

    # Multi-row-tile path (2 tiles of 8 rows each) — exercises the halo logic.
    out = jax.block_until_ready(grad_layer(x, row_tile=8))
    ref = _grad_layer_ref(x)
    assert out.shape == (2, 1, 16, 16)
    assert jnp.allclose(out, ref, atol=1e-5, rtol=1e-5)

    # Single-tile / grayscale-input path.
    x1 = jax.random.uniform(jax.random.PRNGKey(1), (2, 1, 16, 16), dtype=jnp.float32)
    out1 = jax.block_until_ready(grad_layer(x1))
    assert jnp.allclose(out1, _grad_layer_ref(x1), atol=1e-5, rtol=1e-5)

    print("KERNEL_OK")
</pallas_src>

<mosaic_0001>
module attributes {stable_mosaic.version = 11 : i64} {
  func.func @kernel(%arg0: i32, %arg1: i32, %arg2: memref<1x3x8x16xf32, #tpu.memory_space<vmem>>, %arg3: memref<1x1x3x16xf32, #tpu.memory_space<vmem>>, %arg4: memref<1x1x3x16xf32, #tpu.memory_space<vmem>>, %arg5: memref<1x1x8x16xf32, #tpu.memory_space<vmem>>, %arg6: memref<10x18xf32, #tpu.memory_space<vmem>>) attributes {dimension_semantics = [#tpu.dimension_semantics<parallel>, #tpu.dimension_semantics<parallel>], iteration_bounds = array<i64: 2, 2>, scalar_prefetch = 0 : i64, scratch_operands = 1 : i64, tpu.core_type = #tpu.core_type<tc>, window_params = [{transform_indices = @transform_0, window_bounds = array<i64: 1, 3, 8, 16>}, {transform_indices = @transform_1, window_bounds = array<i64: 1, 1, 3, 16>}, {transform_indices = @transform_2, window_bounds = array<i64: 1, 1, 3, 16>}, {transform_indices = @transform_3, window_bounds = array<i64: 1, 1, 8, 16>}]} {
    %c0 = arith.constant 0 : index
    %c0_0 = arith.constant 0 : index
    %c0_1 = arith.constant 0 : index
    %c0_2 = arith.constant 0 : index
    %0 = vector.load %arg2[%c0, %c0_0, %c0_1, %c0_2] : memref<1x3x8x16xf32, #tpu.memory_space<vmem>>, vector<1x3x8x16xf32>
    %1 = vector.shape_cast %0 : vector<1x3x8x16xf32> to vector<3x8x16xf32>
    %c0_3 = arith.constant 0 : index
    %c0_4 = arith.constant 0 : index
    %c0_5 = arith.constant 0 : index
    %c0_6 = arith.constant 0 : index
    %2 = vector.load %arg3[%c0_3, %c0_4, %c0_5, %c0_6] : memref<1x1x3x16xf32, #tpu.memory_space<vmem>>, vector<1x1x3x16xf32>
    %3 = vector.shape_cast %2 : vector<1x1x3x16xf32> to vector<3x16xf32>
    %c0_7 = arith.constant 0 : index
    %c0_8 = arith.constant 0 : index
    %c0_9 = arith.constant 0 : index
    %c0_10 = arith.constant 0 : index
    %4 = vector.load %arg4[%c0_7, %c0_8, %c0_9, %c0_10] : memref<1x1x3x16xf32, #tpu.memory_space<vmem>>, vector<1x1x3x16xf32>
    %5 = vector.shape_cast %4 : vector<1x1x3x16xf32> to vector<3x16xf32>
    %6 = vector.extract_strided_slice %1 {offsets = [0, 0, 0], sizes = [1, 8, 16], strides = [1, 1, 1]} : vector<3x8x16xf32> to vector<1x8x16xf32>
    %7 = vector.shape_cast %6 : vector<1x8x16xf32> to vector<8x16xf32>
    %cst = arith.constant 0.256789058 : f32
    %8 = vector.broadcast %cst : f32 to vector<8x16xf32>
    %9 = arith.mulf %8, %7 : vector<8x16xf32>
    %10 = vector.extract_strided_slice %3 {offsets = [0, 0], sizes = [1, 16], strides = [1, 1]} : vector<3x16xf32> to vector<1x16xf32>
    %cst_11 = arith.constant 0.256789058 : f32
    %11 = vector.broadcast %cst_11 : f32 to vector<1x16xf32>
    %12 = arith.mulf %11, %10 : vector<1x16xf32>
    %13 = vector.extract_strided_slice %5 {offsets = [0, 0], sizes = [1, 16], strides = [1, 1]} : vector<3x16xf32> to vector<1x16xf32>
    %cst_12 = arith.constant 0.256789058 : f32
    %14 = vector.broadcast %cst_12 : f32 to vector<1x16xf32>
    %15 = arith.mulf %14, %13 : vector<1x16xf32>
    %16 = vector.extract_strided_slice %1 {offsets = [1, 0, 0], sizes = [1, 8, 16], strides = [1, 1, 1]} : vector<3x8x16xf32> to vector<1x8x16xf32>
    %17 = vector.shape_cast %16 : vector<1x8x16xf32> to vector<8x16xf32>
    %cst_13 = arith.constant 0.504128933 : f32
    %18 = vector.broadcast %cst_13 : f32 to vector<8x16xf32>
    %19 = arith.mulf %18, %17 : vector<8x16xf32>
    %20 = arith.addf %9, %19 : vector<8x16xf32>
    %21 = vector.extract_strided_slice %3 {offsets = [1, 0], sizes = [1, 16], strides = [1, 1]} : vector<3x16xf32> to vector<1x16xf32>
    %cst_14 = arith.constant 0.504128933 : f32
    %22 = vector.broadcast %cst_14 : f32 to vector<1x16xf32>
    %23 = arith.mulf %22, %21 : vector<1x16xf32>
    %24 = arith.addf %12, %23 : vector<1x16xf32>
    %25 = vector.extract_strided_slice %5 {offsets = [1, 0], sizes = [1, 16], strides = [1, 1]} : vector<3x16xf32> to vector<1x16xf32>
    %cst_15 = arith.constant 0.504128933 : f32
    %26 = vector.broadcast %cst_15 : f32 to vector<1x16xf32>
    %27 = arith.mulf %26, %25 : vector<1x16xf32>
    %28 = arith.addf %15, %27 : vector<1x16xf32>
    %29 = vector.extract_strided_slice %1 {offsets = [2, 0, 0], sizes = [1, 8, 16], strides = [1, 1, 1]} : vector<3x8x16xf32> to vector<1x8x16xf32>
    %30 = vector.shape_cast %29 : vector<1x8x16xf32> to vector<8x16xf32>
    %cst_16 = arith.constant 0.0979062467 : f32
    %31 = vector.broadcast %cst_16 : f32 to vector<8x16xf32>
    %32 = arith.mulf %31, %30 : vector<8x16xf32>
    %33 = arith.addf %20, %32 : vector<8x16xf32>
    %34 = vector.extract_strided_slice %3 {offsets = [2, 0], sizes = [1, 16], strides = [1, 1]} : vector<3x16xf32> to vector<1x16xf32>
    %cst_17 = arith.constant 0.0979062467 : f32
    %35 = vector.broadcast %cst_17 : f32 to vector<1x16xf32>
    %36 = arith.mulf %35, %34 : vector<1x16xf32>
    %37 = arith.addf %24, %36 : vector<1x16xf32>
    %38 = vector.extract_strided_slice %5 {offsets = [2, 0], sizes = [1, 16], strides = [1, 1]} : vector<3x16xf32> to vector<1x16xf32>
    %cst_18 = arith.constant 0.0979062467 : f32
    %39 = vector.broadcast %cst_18 : f32 to vector<1x16xf32>
    %40 = arith.mulf %39, %38 : vector<1x16xf32>
    %41 = arith.addf %28, %40 : vector<1x16xf32>
    %c0_19 = arith.constant 0 : index
    %c1 = arith.constant 1 : index
    %42 = vector.load %arg6[%c0_19, %c1] : memref<10x18xf32, #tpu.memory_space<vmem>>, vector<1x16xf32>
    tpu.vector_store %arg6[%c0_19, %c1], %37 {strides = array<i32>} : memref<10x18xf32, #tpu.memory_space<vmem>>, vector<1x16xf32>,
    %c1_20 = arith.constant 1 : index
    %c1_21 = arith.constant 1 : index
    %43 = vector.load %arg6[%c1_20, %c1_21] : memref<10x18xf32, #tpu.memory_space<vmem>>, vector<8x16xf32>
    tpu.vector_store %arg6[%c1_20, %c1_21], %33 {strides = array<i32>} : memref<10x18xf32, #tpu.memory_space<vmem>>, vector<8x16xf32>,
    %c9 = arith.constant 9 : index
    %c1_22 = arith.constant 1 : index
    %44 = vector.load %arg6[%c9, %c1_22] : memref<10x18xf32, #tpu.memory_space<vmem>>, vector<1x16xf32>
    tpu.vector_store %arg6[%c9, %c1_22], %41 {strides = array<i32>} : memref<10x18xf32, #tpu.memory_space<vmem>>, vector<1x16xf32>,
    %cst_23 = arith.constant 0.000000e+00 : f32
    %45 = vector.broadcast %cst_23 : f32 to vector<10x1xf32>
    %c0_24 = arith.constant 0 : index
    %c0_25 = arith.constant 0 : index
    %46 = vector.load %arg6[%c0_24, %c0_25] : memref<10x18xf32, #tpu.memory_space<vmem>>, vector<10x1xf32>
    tpu.vector_store %arg6[%c0_24, %c0_25], %45 {strides = array<i32>} : memref<10x18xf32, #tpu.memory_space<vmem>>, vector<10x1xf32>,
    %c0_26 = arith.constant 0 : index
    %c17 = arith.constant 17 : index
    %47 = vector.load %arg6[%c0_26, %c17] : memref<10x18xf32, #tpu.memory_space<vmem>>, vector<10x1xf32>
    tpu.vector_store %arg6[%c0_26, %c17], %45 {strides = array<i32>} : memref<10x18xf32, #tpu.memory_space<vmem>>, vector<10x1xf32>,
    %c0_27 = arith.constant 0 : index
    %c0_28 = arith.constant 0 : index
    %48 = vector.load %arg6[%c0_27, %c0_28] : memref<10x18xf32, #tpu.memory_space<vmem>>, vector<10x18xf32>
    %49 = vector.extract_strided_slice %48 {offsets = [0, 0], sizes = [8, 18], strides = [1, 1]} : vector<10x18xf32> to vector<8x18xf32>
    %50 = vector.extract_strided_slice %48 {offsets = [1, 0], sizes = [8, 18], strides = [1, 1]} : vector<10x18xf32> to vector<8x18xf32>
    %51 = vector.extract_strided_slice %48 {offsets = [2, 0], sizes = [8, 18], strides = [1, 1]} : vector<10x18xf32> to vector<8x18xf32>
    %cst_29 = arith.constant 2.000000e+00 : f32
    %52 = vector.broadcast %cst_29 : f32 to vector<8x18xf32>
    %53 = arith.mulf %52, %50 : vector<8x18xf32>
    %54 = arith.addf %49, %53 : vector<8x18xf32>
    %55 = arith.addf %54, %51 : vector<8x18xf32>
    %56 = arith.subf %49, %51 : vector<8x18xf32>
    %57 = vector.extract_strided_slice %55 {offsets = [0, 2], sizes = [8, 16], strides = [1, 1]} : vector<8x18xf32> to vector<8x16xf32>
    %58 = vector.extract_strided_slice %55 {offsets = [0, 0], sizes = [8, 16], strides = [1, 1]} : vector<8x18xf32> to vector<8x16xf32>
    %59 = arith.subf %57, %58 : vector<8x16xf32>
    %60 = vector.extract_strided_slice %56 {offsets = [0, 0], sizes = [8, 16], strides = [1, 1]} : vector<8x18xf32> to vector<8x16xf32>
    %61 = vector.extract_strided_slice %56 {offsets = [0, 1], sizes = [8, 16], strides = [1, 1]} : vector<8x18xf32> to vector<8x16xf32>
    %cst_30 = arith.constant 2.000000e+00 : f32
    %62 = vector.broadcast %cst_30 : f32 to vector<8x16xf32>
    %63 = arith.mulf %62, %61 : vector<8x16xf32>
    %64 = arith.addf %60, %63 : vector<8x16xf32>
    %65 = vector.extract_strided_slice %56 {offsets = [0, 2], sizes = [8, 16], strides = [1, 1]} : vector<8x18xf32> to vector<8x16xf32>
    %66 = arith.addf %64, %65 : vector<8x16xf32>
    %67 = arith.mulf %59, %59 : vector<8x16xf32>
    %68 = arith.mulf %66, %66 : vector<8x16xf32>
    %69 = arith.addf %67, %68 : vector<8x16xf32>
    %cst_31 = arith.constant 9.99999997E-7 : f32
    %70 = vector.broadcast %cst_31 : f32 to vector<8x16xf32>
    %71 = arith.addf %69, %70 : vector<8x16xf32>
    %72 = math.sqrt %71 : vector<8x16xf32>
    %c0_32 = arith.constant 0 : index
    %c0_33 = arith.constant 0 : index
    %c0_34 = arith.constant 0 : index
    %c0_35 = arith.constant 0 : index
    %73 = vector.load %arg5[%c0_32, %c0_33, %c0_34, %c0_35] : memref<1x1x8x16xf32, #tpu.memory_space<vmem>>, vector<1x1x8x16xf32>
    %74 = vector.shape_cast %73 : vector<1x1x8x16xf32> to vector<8x16xf32>
    %75 = vector.shape_cast %72 : vector<8x16xf32> to vector<1x1x8x16xf32>
    tpu.vector_store %arg5[%c0_32, %c0_33, %c0_34, %c0_35], %75 {strides = array<i32>} : memref<1x1x8x16xf32, #tpu.memory_space<vmem>>, vector<1x1x8x16xf32>,
    return
  }
  func.func @transform_0(%arg0: i32, %arg1: i32) -> (i32, i32, i32, i32) {
    %c0_i32 = arith.constant 0 : i32
    %c0_i32_0 = arith.constant 0 : i32
    %c0_i32_1 = arith.constant 0 : i32
    return %arg0, %c0_i32, %arg1, %c0_i32_0 : i32, i32, i32, i32
  }
  func.func @transform_1(%arg0: i32, %arg1: i32) -> (i32, i32, i32, i32) {
    %c0_i32 = arith.constant 0 : i32
    %c0_i32_0 = arith.constant 0 : i32
    %c0_i32_1 = arith.constant 0 : i32
    return %arg0, %arg1, %c0_i32, %c0_i32_0 : i32, i32, i32, i32
  }
  func.func @transform_2(%arg0: i32, %arg1: i32) -> (i32, i32, i32, i32) {
    %c0_i32 = arith.constant 0 : i32
    %c0_i32_0 = arith.constant 0 : i32
    %c0_i32_1 = arith.constant 0 : i32
    return %arg0, %arg1, %c0_i32, %c0_i32_0 : i32, i32, i32, i32
  }
  func.func @transform_3(%arg0: i32, %arg1: i32) -> (i32, i32, i32, i32) {
    %c0_i32 = arith.constant 0 : i32
    %c0_i32_0 = arith.constant 0 : i32
    %c0_i32_1 = arith.constant 0 : i32
    return %arg0, %c0_i32, %arg1, %c0_i32_0 : i32, i32, i32, i32
  }
}

</mosaic_0001>

<llo_original>
// kernel: tpu_custom_call.1
$region0: #{tpu_custom_call.1}
  #allocation0 [shape = 'u32[]', space=smem, size = 0x4, offset = 0x4, fixed_abs, tag = 'smem constant byte address 0x4 - core index']
  #allocation1 [shape = 'u32[72,128]{1,0:T(1,128)}', space=vmem, size = 0x9000, scoped, tag = 'internal scratch']
  #allocation2 [shape = 'f32[10,18]{1,0:T(8,128)}', space=vmem, size = 0x2000, scoped, tag = 'scratch operand']
  %s0 = inlined_call_operand.hbm [shape: f32[2,3,16,16], index: 0, kind: input, shape index: {}]
  %s1 = inlined_call_operand.vmem [shape: f32[2,2,3,16], index: 1, kind: input, shape index: {}]
  %s2 = inlined_call_operand.vmem [shape: f32[2,2,3,16], index: 2, kind: input, shape index: {}]
  %s3 = inlined_call_operand.hbm [shape: f32[2,1,16,16], index: 3, kind: output, shape index: {}]
  %s4 = sld [smem:[#allocation0]]
  $region49: #{tpu_custom_call.1} parent=0
    _
  %s6 = ssub.s32 1, %s4
  %s7 = scalar_select 0, %s6, %s4
  $region1: #{tpu_custom_call.1} parent=0
    #allocation3 [shape = 'u8[24576]{0}', space=vmem, size = 0x6000, scoped, tag = 'input window, operand 0']
    #allocation4 [shape = 's32[2]{0}', space=sflag, size = 0x8, scoped, tag = 'scoped memory for tpu_custom_call.1']
    #allocation5 [shape = 's32[2]{0}', space=sflag, size = 0x8, scoped, tag = 'scoped memory for tpu_custom_call.1']
    #allocation6 [shape = 'u8[8192]{0}', space=vmem, size = 0x2000, scoped, tag = 'output window, operand 0']
    %8 = vsyncpa [#allocation4], 0
    %s9 = scalar_lea.sflag [#allocation4], 1
    %10 = vsyncpa %s9, 0
    %11 = vsyncpa [#allocation5], 0
    %s12 = scalar_lea.sflag [#allocation5], 1
    %13 = vsyncpa %s12, 0
    loop: start=0, step=1, limit=6
    $region2: #{tpu_custom_call.1} parent=1 // loop_pre_header
      _
    $region3: #{tpu_custom_call.1} parent=1 // loop_header
      %s15 = sphi 0, %s19
      %p16 = scmp.ge.s32.totalorder %s15, 6
      %s22 = sphi 0, %s34
      %s23 = sphi 0, %s30
      %s24 = sphi 0, %s22
      %s25 = sphi 0, %s23
      %s26 = sphi 0, %s24
      %s27 = sphi 0, %s25
      %s39 = sphi 0, %s41
      %s42 = sphi 0, %s39
      %s43 = sphi 0, %s42
      %s59 = sphi 0, %s43
      %s67 = sphi 0, %s69
      %s70 = sphi 0, %s67
      %s71 = sphi 0, %s70
      %s87 = sphi 0, %s71
      %s95 = sphi 0, %s97
      %s98 = sphi 0, %s95
      %s99 = sphi 0, %s98
      %s115 = sphi 0, %s99
      %s123 = sphi 0, %s125
      %s126 = sphi 0, %s123
      %s127 = sphi 0, %s126
      %s143 = sphi 0, %s127
    $region4: #{tpu_custom_call.1} parent=1 // loop_header_branch
      %18 = sbr.rel (%p16) target = $region8
    $region5: #{tpu_custom_call.1} parent=1 // loop_body
      %s20 = ssub.s32 %s15, 1
      %s21 = ssub.s32 %s15, 2
      %s28 = sadd.s32 1, %s23
      %p29 = scmp.ge.s32.totalorder %s28, 2
      %s30 = scalar_select %p29, 0, %s28
      %s31 = sadd.s32 1, %s22
      %s32 = scalar_select %p29, %s31, %s22
      %p33 = scmp.ge.s32.totalorder %s32, 2
      %s34 = scalar_select %p33, 0, %s32
      %s35 = ssub.s32 %s22, %s34
      %s36 = ssub.s32 %s23, %s30
      %s37 = sor.u32 %s35, %s36
      %p38 = scmp.eq.s32.totalorder %s37, 0
      %s40 = sadd.s32 %s39, 1
      %s41 = scalar_select %p38, %s39, %s40
      %p44 = pneg %p38
      %p45 = scmp.eq.s32.totalorder %s15, 3
      %p46 = por %p44, %p45
      %p47 = scmp.ne.s32.totalorder %s39, %s42
      %p48 = scmp.eq.s32.totalorder %s15, 0
      %p49 = por %p47, %p48
      %p50 = scmp.ne.s32.totalorder %s39, %s42
      %p51 = scmp.eq.s32.totalorder %s20, 3
      %p52 = por %p50, %p51
      %p53 = scmp.ne.s32.totalorder %s42, %s43
      %p54 = scmp.eq.s32.totalorder %s20, 0
      %p55 = por %p53, %p54
      %p56 = scmp.ne.s32.totalorder %s42, %s43
      %p57 = scmp.eq.s32.totalorder %s21, 3
      %p58 = por %p56, %p57
      %p60 = scmp.ne.s32.totalorder %s43, %s59
      %p61 = scmp.eq.s32.totalorder %s21, 0
      %p62 = por %p60, %p61
      %s63 = ssub.s32 %s22, %s34
      %s64 = ssub.s32 %s23, %s30
      %s65 = sor.u32 %s63, %s64
      %p66 = scmp.eq.s32.totalorder %s65, 0
      %s68 = sadd.s32 %s67, 1
      %s69 = scalar_select %p66, %s67, %s68
      %p72 = pneg %p66
      %p73 = scmp.eq.s32.totalorder %s15, 3
      %p74 = por %p72, %p73
      %p75 = scmp.ne.s32.totalorder %s67, %s70
      %p76 = scmp.eq.s32.totalorder %s15, 0
      %p77 = por %p75, %p76
      %p78 = scmp.ne.s32.totalorder %s67, %s70
      %p79 = scmp.eq.s32.totalorder %s20, 3
      %p80 = por %p78, %p79
      %p81 = scmp.ne.s32.totalorder %s70, %s71
      %p82 = scmp.eq.s32.totalorder %s20, 0
      %p83 = por %p81, %p82
      %p84 = scmp.ne.s32.totalorder %s70, %s71
      %p85 = scmp.eq.s32.totalorder %s21, 3
      %p86 = por %p84, %p85
      %p88 = scmp.ne.s32.totalorder %s71, %s87
      %p89 = scmp.eq.s32.totalorder %s21, 0
      %p90 = por %p88, %p89
      %s91 = ssub.s32 %s22, %s34
      %s92 = ssub.s32 %s23, %s30
      %s93 = sor.u32 %s91, %s92
      %p94 = scmp.eq.s32.totalorder %s93, 0
      %s96 = sadd.s32 %s95, 1
      %s97 = scalar_select %p94, %s95, %s96
      %p100 = pneg %p94
      %p101 = scmp.eq.s32.totalorder %s15, 3
      %p102 = por %p100, %p101
      %p103 = scmp.ne.s32.totalorder %s95, %s98
      %p104 = scmp.eq.s32.totalorder %s15, 0
      %p105 = por %p103, %p104
      %p106 = scmp.ne.s32.totalorder %s95, %s98
      %p107 = scmp.eq.s32.totalorder %s20, 3
      %p108 = por %p106, %p107
      %p109 = scmp.ne.s32.totalorder %s98, %s99
      %p110 = scmp.eq.s32.totalorder %s20, 0
      %p111 = por %p109, %p110
      %p112 = scmp.ne.s32.totalorder %s98, %s99
      %p113 = scmp.eq.s32.totalorder %s21, 3
      %p114 = por %p112, %p113
      %p116 = scmp.ne.s32.totalorder %s99, %s115
      %p117 = scmp.eq.s32.totalorder %s21, 0
      %p118 = por %p116, %p117
      %s119 = ssub.s32 %s22, %s34
      %s120 = ssub.s32 %s23, %s30
      %s121 = sor.u32 %s119, %s120
      %p122 = scmp.eq.s32.totalorder %s121, 0
      %s124 = sadd.s32 %s123, 1
      %s125 = scalar_select %p122, %s123, %s124
      %p128 = pneg %p122
      %p129 = scmp.eq.s32.totalorder %s15, 3
      %p130 = por %p128, %p129
      %p131 = scmp.ne.s32.totalorder %s123, %s126
      %p132 = scmp.eq.s32.totalorder %s15, 0
      %p133 = por %p131, %p132
      %p134 = scmp.ne.s32.totalorder %s123, %s126
      %p135 = scmp.eq.s32.totalorder %s20, 3
      %p136 = por %p134, %p135
      %p137 = scmp.ne.s32.totalorder %s126, %s127
      %p138 = scmp.eq.s32.totalorder %s20, 0
      %p139 = por %p137, %p138
      %p140 = scmp.ne.s32.totalorder %s126, %s127
      %p141 = scmp.eq.s32.totalorder %s21, 3
      %p142 = por %p140, %p141
      %p144 = scmp.ne.s32.totalorder %s127, %s143
      %p145 = scmp.eq.s32.totalorder %s21, 0
      %p146 = por %p144, %p145
      %p147 = scmp.le.s32.totalorder 1, %s15
      %p148 = scmp.lt.s32.totalorder %s15, 5
      %p149 = pnand %p147, %p148
      %p150 = pneg %p149
      // Predicated region
      $region9: #{tpu_custom_call.1} parent=5 // pred_check
        _
      $region10: #{tpu_custom_call.1} parent=5 // pred_check_branch
        %152 = sbr.rel (%p149) target = $region12
      $region11: #{tpu_custom_call.1} parent=5 // pred_region
        %s153 = ssub.s32 %s15, 1
      $region12: #{tpu_custom_call.1} parent=5 // pred_fallthru
        _
      %p154 = scmp.lt.s32.totalorder %s15, 4
      // Predicated region
      $region13: #{tpu_custom_call.1} parent=5 // pred_check
        %p155 = pneg %p154
      $region14: #{tpu_custom_call.1} parent=5 // pred_check_branch
        %157 = sbr.rel (%p155) target = $region16
      $region15: #{tpu_custom_call.1} parent=5 // pred_region
        // Predicated region
        $region17: #{tpu_custom_call.1} parent=15 // pred_check
          %p158 = pneg %p49
        $region18: #{tpu_custom_call.1} parent=15 // pred_check_branch
          %160 = sbr.rel (%p158) target = $region20
        $region19: #{tpu_custom_call.1} parent=15 // pred_region
          %s161 = sand.u32 %s39, 1
          %s162 = scalar_lea.sflag [#allocation4], %s161
          %s163 = sand.u32 %s39, 1
          %s164 = smul.addr %s163, 24
          %s165 = scalar_lea.vmem [#allocation3], %s164
          %167 = vsyncadd %s162, 0
          %s168 = smul.addr %s22, 6
          %s169 = sadd.s32 %s23, %s168
          %s170 = smul.addr %s169, 8
          %s171 = scalar_lea.hbm %s0, %s170
          %s172 = sshll.u32 %s171, 4
          %s173 = int_to_ptr.hbm [resolvable:$true] %s172
          %s174 = sshll.u32 %s165, 4
          %s175 = int_to_ptr.vmem [resolvable:$true] %s174
          %180 = dma.hbm_to_vmem [thread:$0]  %s173, 384, %s175, %s162, 256, 128, 8
        $region20: #{tpu_custom_call.1} parent=15 // pred_fallthru
          _
        // Predicated region
        $region21: #{tpu_custom_call.1} parent=15 // pred_check
          %p181 = pneg %p77
        $region22: #{tpu_custom_call.1} parent=15 // pred_check_branch
          %183 = sbr.rel (%p181) target = $region24
        $region23: #{tpu_custom_call.1} parent=15 // pred_region
          %p184 = scmp.lt.s32.totalorder %s22, 1
          %s185 = scalar_select %p184, %s22, 1
          %p186 = scmp.lt.s32.totalorder %s23, 1
          %s187 = scalar_select %p186, %s23, 1
          %s188 = smul.addr %s185, 2
          %s189 = sadd.s32 %s187, %s188
          %s190 = smul.addr %s189, 4
          %s191 = scalar_lea.vmem %s1, %s190
        $region24: #{tpu_custom_call.1} parent=15 // pred_fallthru
          _
        // Predicated region
        $region25: #{tpu_custom_call.1} parent=15 // pred_check
          %p192 = pneg %p105
        $region26: #{tpu_custom_call.1} parent=15 // pred_check_branch
          %194 = sbr.rel (%p192) target = $region28
        $region27: #{tpu_custom_call.1} parent=15 // pred_region
          %p195 = scmp.lt.s32.totalorder %s22, 1
          %s196 = scalar_select %p195, %s22, 1
          %p197 = scmp.lt.s32.totalorder %s23, 1
          %s198 = scalar_select %p197, %s23, 1
          %s199 = smul.addr %s196, 2
          %s200 = sadd.s32 %s198, %s199
          %s201 = smul.addr %s200, 4
          %s202 = scalar_lea.vmem %s2, %s201
        $region28: #{tpu_custom_call.1} parent=15 // pred_fallthru
          _
      $region16: #{tpu_custom_call.1} parent=5 // pred_fallthru
        _
      %p203 = scmp.le.s32.totalorder 1, %s15
      %p204 = scmp.lt.s32.totalorder %s15, 5
      %p205 = pnand %p203, %p204
      %p206 = pneg %p205
      // Predicated region
      $region29: #{tpu_custom_call.1} parent=5 // pred_check
        _
      $region30: #{tpu_custom_call.1} parent=5 // pred_check_branch
        %208 = sbr.rel (%p205) target = $region32
      $region31: #{tpu_custom_call.1} parent=5 // pred_region
        %s209 = ssub.s32 %s15, 1
        %s210 = sand.u32 %s42, 1
        %s211 = scalar_lea.sflag [#allocation4], %s210
        %s212 = sand.u32 %s42, 1
        %s213 = smul.addr %s212, 24
        %s214 = scalar_lea.vmem [#allocation3], %s213
        // Predicated region
        $region33: #{tpu_custom_call.1} parent=31 // pred_check
          %p215 = pneg %p55
        $region34: #{tpu_custom_call.1} parent=31 // pred_check_branch
          %217 = sbr.rel (%p215) target = $region36
        $region35: #{tpu_custom_call.1} parent=31 // pred_region
          %219 = dma.done %s211, 384
        $region36: #{tpu_custom_call.1} parent=31 // pred_fallthru
          _
        %s220 = sand.u32 %s42, 1
        %s221 = scalar_lea.sflag [#allocation4], %s220
        %s222 = sand.u32 %s42, 1
        %s223 = smul.addr %s222, 24
        %s224 = scalar_lea.vmem [#allocation3], %s223
        %p225 = pneg %p55
        %p226 = pneg %p52
        %p227 = scmp.lt.s32.totalorder %s24, 1
        %s228 = scalar_select %p227, %s24, 1
        %p229 = scmp.lt.s32.totalorder %s25, 1
        %s230 = scalar_select %p229, %s25, 1
        %s231 = smul.addr %s228, 2
        %s232 = sadd.s32 %s230, %s231
        %s233 = smul.addr %s232, 4
        %s234 = scalar_lea.vmem %s1, %s233
        %p235 = pneg %p83
        %p236 = pneg %p80
        %p237 = scmp.lt.s32.totalorder %s24, 1
        %s238 = scalar_select %p237, %s24, 1
        %p239 = scmp.lt.s32.totalorder %s25, 1
        %s240 = scalar_select %p239, %s25, 1
        %s241 = smul.addr %s238, 2
        %s242 = sadd.s32 %s240, %s241
        %s243 = smul.addr %s242, 4
        %s244 = scalar_lea.vmem %s2, %s243
        %p245 = pneg %p111
        %p246 = pneg %p108
        %p247 = pneg %p139
        %p248 = pneg %p136
        %s249 = sand.u32 %s126, 1
        %s250 = scalar_lea.sflag [#allocation5], %s249
        %s251 = sand.u32 %s126, 1
        %s252 = smul.addr %s251, 8
        %s253 = scalar_lea.vmem [#allocation6], %s252
        %p254 = scmp.lt.s32.totalorder %s24, 1
        %s255 = scalar_select %p254, %s24, 1
        %p256 = scmp.lt.s32.totalorder %s25, 1
        %s257 = scalar_select %p256, %s25, 1
        %s258 = smul.addr %s255, 2
        %s259 = sadd.s32 %s257, %s258
        %s260 = smul.addr %s259, 4
        %s261 = scalar_lea.vmem %s1, %s260
        %p262 = scmp.lt.s32.totalorder %s24, 1
        %s263 = scalar_select %p262, %s24, 1
        %p264 = scmp.lt.s32.totalorder %s25, 1
        %s265 = scalar_select %p264, %s25, 1
        %s266 = smul.addr %s263, 2
        %s267 = sadd.s32 %s265, %s266
        %s268 = smul.addr %s267, 4
        %s269 = scalar_lea.vmem %s2, %s268
        %v270 = vld [vmem:[%s214] sm:$0xff]
        %v271 = vld [vmem:[%s214 + $0x8] sm:$0xff]
        %v272 = vld [vmem:[%s214 + $0x10] sm:$0xff]
        %v273 = vld [vmem:[%s261] sm:$0x7]
        %v274 = vld [vmem:[%s269] sm:$0x7]
        %v275 = vmul.f32 %v270, 0.25678906
        %v276 = vmul.f32 %v273, 0.25678906
        %v277 = vmul.f32 %v274, 0.25678906
        %v278 = vmul.f32 %v271, 0.50412893
        %v279 = vadd.f32 %v275, %v278
        %v280 = vmul.f32 %v273, 0.50412893
        %v282 = vrot.slane %v280, 1
        %v284 = vadd.f32 %v276, %v282
        %v285 = vmul.f32 %v274, 0.50412893
        %v287 = vrot.slane %v285, 1
        %v289 = vadd.f32 %v277, %v287
        %v290 = vmul.f32 %v272, 0.09790625
        %v291 = vadd.f32 %v279, %v290
        %v292 = vmul.f32 %v273, 0.09790625
        %v294 = vrot.slane %v292, 2
        %v296 = vadd.f32 %v284, %v294
        %v297 = vmul.f32 %v274, 0.09790625
        %v299 = vrot.slane %v297, 2
        %v301 = vadd.f32 %v289, %v299
        %303 = vrot.lane.b32.xlu0 %v296, 1
        %v304 = vpop.permute.xlu0 %303
        %vm306 = vcmask 131080
        %307 = vst.msk [vmem:[#allocation2] sm:$0x1] %vm306, %v304
        %309 = vrot.lane.b32.xlu0 %v291, 1
        %v310 = vpop.permute.xlu0 %309
        %vm312 = vcmask 138248
        %313 = vst.msk [vmem:[#allocation2 + $0x1] sm:$0xff] %vm312, %v310
        %315 = vrot.lane.b32.xlu0 %v301, 1
        %v316 = vpop.permute.xlu0 %315
        %318 = vst.msk [vmem:[#allocation2 + $0x9] sm:$0x1] %vm306, %v316
        %vm319 = vcmask 7168
        %320 = vst.msk [vmem:[#allocation2] sm:$0xff] %vm319, 0.0
        %vm321 = vcmask 1024
        %322 = vst.msk [vmem:[#allocation2 + $0x8] sm:$0x3] %vm321, 0.0
        %vm323 = vcmask 146568
        %324 = vst.msk [vmem:[#allocation2] sm:$0xff] %vm323, 0.0
        %vm325 = vcmask 140424
        %326 = vst.msk [vmem:[#allocation2 + $0x8] sm:$0x3] %vm325, 0.0
        %v327 = vld [vmem:[#allocation2] sm:$0xff]
        %v328 = vld [vmem:[#allocation2 + $0x8] sm:$0x3]
        %v329 = vmul.f32 %v327, 2.0
        %v330 = vmul.f32 %v328, 2.0
        %vm333 = vcmask 1046528
        %v334 = vrot.slane %v329, 1
        %v335 = vrot.slane %v330, 1
        %v336 = vsel %vm333, %v334, %v335
        %v338 = vadd.f32 %v327, %v336
        %vm341 = vcmask 1045504
        %v342 = vrot.slane %v327, 2
        %v343 = vrot.slane %v328, 2
        %v344 = vsel %vm341, %v342, %v343
        %v346 = vadd.f32 %v338, %v344
        %v347 = vsub.f32 %v327, %v344
        %349 = vrot.lane.b32.xlu0 %v346, 2
        %v350 = vpop.permute.xlu0 %349
        %v352 = vsub.f32 %v346, %v350
        %v353 = vmul.f32 %v347, 2.0
        %355 = vrot.lane.b32.xlu0 %v353, 127
        %v356 = vpop.permute.xlu0 %355
        %v358 = vadd.f32 %v347, %v356
        %360 = vrot.lane.b32.xlu0 %v347, 126
        %v361 = vpop.permute.xlu0 %360
        %v363 = vadd.f32 %v358, %v361
        %v364 = vmul.f32 %v352, %v352
        %v365 = vmul.f32 %v363, %v363
        %367 = vrot.lane.b32.xlu0 %v365, 2
        %v368 = vpop.permute.xlu0 %367
        %v370 = vadd.f32 %v364, %v368
        %v371 = vadd.f32 %v370, 1e-06
        %v372 = vrsqrt.pop %v371
        %v373 = vmul.f32 %v372, %v371
        %v374 = vmul.f32 %v373, %v372
        %v375 = vmul.f32 0.5, %v374
        %v376 = vsub.f32 1.5, %v375
        %v377 = vmul.f32 %v372, %v376
        %v378 = vmul.f32 %v371, %v377
        %vm379 = vcmp.eq.f32.partialorder %v371, inf
        %v380 = vsel %vm379, %v371, %v378
        %vm381 = vcmp.eq.f32.partialorder %v371, 0.0
        %v382 = vand.u32 %v371, 2147483648
        %v383 = vsel %vm381, %v382, %v380
        %385 = vrot.lane.b32.xlu0 %v383, 126
        %v386 = vpop.permute.xlu0 %385
        %vm388 = vcmask 130048
        %389 = vst.msk [vmem:[%s253] sm:$0xff] %vm388, %v386
        %s390 = sand.u32 %s126, 1
        %s391 = scalar_lea.sflag [#allocation5], %s390
        %s392 = sand.u32 %s126, 1
        %s393 = smul.addr %s392, 8
        %s394 = scalar_lea.vmem [#allocation6], %s393
        // Predicated region
        $region37: #{tpu_custom_call.1} parent=31 // pred_check
          %p395 = pneg %p136
        $region38: #{tpu_custom_call.1} parent=31 // pred_check_branch
          %397 = sbr.rel (%p395) target = $region40
        $region39: #{tpu_custom_call.1} parent=31 // pred_region
          %399 = vsyncadd %s391, 0
          %s400 = smul.addr %s24, 2
          %s401 = sadd.s32 %s25, %s400
          %s402 = smul.addr %s401, 8
          %s403 = scalar_lea.hbm %s3, %s402
          %s405 = sshll.u32 %s394, 4
          %s406 = int_to_ptr.vmem [resolvable:$true] %s405
          %s407 = sshll.u32 %s403, 4
          %s408 = int_to_ptr.hbm [resolvable:$true] %s407
          %410 = dma.vmem_to_hbm [thread:$0]  %s406, 128, %s408, %s391
        $region40: #{tpu_custom_call.1} parent=31 // pred_fallthru
          _
      $region32: #{tpu_custom_call.1} parent=5 // pred_fallthru
        _
      %p411 = scmp.le.s32.totalorder 2, %s15
      // Predicated region
      $region41: #{tpu_custom_call.1} parent=5 // pred_check
        %p412 = pneg %p411
      $region42: #{tpu_custom_call.1} parent=5 // pred_check_branch
        %414 = sbr.rel (%p412) target = $region44
      $region43: #{tpu_custom_call.1} parent=5 // pred_region
        %s415 = ssub.s32 %s15, 2
        // Predicated region
        $region45: #{tpu_custom_call.1} parent=43 // pred_check
          %p416 = pneg %p142
        $region46: #{tpu_custom_call.1} parent=43 // pred_check_branch
          %418 = sbr.rel (%p416) target = $region48
        $region47: #{tpu_custom_call.1} parent=43 // pred_region
          %s419 = sand.u32 %s127, 1
          %s420 = scalar_lea.sflag [#allocation5], %s419
          %s421 = sand.u32 %s127, 1
          %s422 = smul.addr %s421, 8
          %s423 = scalar_lea.vmem [#allocation6], %s422
          %425 = dma.done %s420, 128
        $region48: #{tpu_custom_call.1} parent=43 // pred_fallthru
          _
      $region44: #{tpu_custom_call.1} parent=5 // pred_fallthru
        _
    $region6: #{tpu_custom_call.1} parent=1 // loop_footer
      %s19 = sadd.s32 1, %s15
    $region7: #{tpu_custom_call.1} parent=1 // loop_footer_branch
      %14 = sbr.rel target = $region3
    $region8: #{tpu_custom_call.1} parent=1 // loop_exit
      _
    %426 = vsyncpa [#allocation4], 1
    %s427 = scalar_lea.sflag [#allocation4], 1
    %428 = vsyncpa %s427, 1
    %429 = vsyncpa [#allocation5], 1
    %s430 = scalar_lea.sflag [#allocation5], 1
    %431 = vsyncpa %s430, 1

</llo_original>
